<compile_context>
chip_gen: v5e
topology: v5e:2x2
jax: 0.10.0
libtpu: 0.0.40
codegen_flags: <defaults>
</compile_context>

<pallas_src>
import functools

import jax
import jax.numpy as jnp
from jax.experimental import pallas as pl
from jax.experimental.pallas import tpu as pltpu


# Batch tile (sublane dim). 8 is the minimum aligned f32 tile; for real RL
# rollout throughput bump to 128/256 (v6e/v7x MXU is 256 wide).
TILE_B = 8
_NEG_BIG = -1e30  # Python float literal -> no captured JAX array constant.


def _a2c_kernel(x_ref, w_ref, b_ref, out_ref, *, dim_output):
    """Fused actor-critic forward for one (TILE_B, D_in) batch tile.

    x_ref   : (TILE_B, D_in)  f32  VMEM  state rows
    w_ref   : (D_in, LANES)   bf16 VMEM  fused weights (actor/beta | critic | 0)
    b_ref   : (1, LANES)      f32  VMEM  fused bias    (actor/beta | critic | 0)
    out_ref : (TILE_B, LANES) f32  VMEM  [pi(0:D_out), v @ lane D_out, 0 ...]
    """
    x = x_ref[...].astype(jnp.bfloat16)           # bf16 MXU operands, f32 accum
    y = jnp.dot(x, w_ref[...],
                preferred_element_type=jnp.float32) + b_ref[...]   # (TILE_B, LANES)

    lane = jax.lax.broadcasted_iota(jnp.int32, y.shape, dimension=1)
    actor_mask = lane < dim_output                 # actor logit lanes

    # 1/beta is already folded into the actor columns of W/b at prepare time,
    # so y[:, :D_out] are exactly the tempered logits.
    z = jnp.where(actor_mask, y, _NEG_BIG)
    m = jnp.max(z, axis=-1, keepdims=True)
    p = jnp.exp(z - m)                             # padded / critic lanes -> 0
    denom = jnp.sum(p, axis=-1, keepdims=True)
    pi = p * pl.reciprocal(denom, approx=True)     # EUP slot, ~free

    # Lane-dense output: pi on actor lanes, raw y elsewhere (lane D_out == v;
    # zero-padded lanes stay 0 because W/b padding is exactly zero).
    out_ref[...] = jnp.where(actor_mask, pi, y)


def prepare_a2c_params(wa, ba, wc, bc, beta=1.0):
    """One-time (init-time) fusion of actor/critic params (+ 1/beta fold) into
    a lane-dense bf16 (D_in, LANES) weight and f32 (1, LANES) bias.

    wa : (dim_output, dim_input)  actor weight (PyTorch layout)
    ba : (dim_output,)            actor bias
    wc : (1, dim_input)           critic weight
    bc : (1,)                     critic bias
    beta : float > 0              softmax temperature (fixed per deployment)
    """
    assert beta > 0, "softmax temperature beta must be > 0"
    dim_output, dim_input = wa.shape
    n_cols = dim_output + 1
    lanes = max(128, pl.cdiv(n_cols, 128) * 128)
    inv_beta = 1.0 / float(beta)

    w = jnp.zeros((dim_input, lanes), jnp.float32)
    w = w.at[:, :dim_output].set(jnp.asarray(wa, jnp.float32).T * inv_beta)
    w = w.at[:, dim_output].set(jnp.asarray(wc, jnp.float32).reshape(dim_input))
    w = w.astype(jnp.bfloat16)                     # narrow MXU operand

    b = jnp.zeros((1, lanes), jnp.float32)
    b = b.at[0, :dim_output].set(jnp.asarray(ba, jnp.float32) * inv_beta)
    b = b.at[0, dim_output].set(jnp.asarray(bc, jnp.float32).reshape(()))

    # Correctness guard: the masked-softmax / v-lane trick relies on the pad
    # columns being exactly zero.
    assert bool(jnp.all(w[:, n_cols:] == 0)), "W pad columns must be zero"
    assert bool(jnp.all(b[0, n_cols:] == 0)), "b pad columns must be zero"

    return w, b, dim_output


def _slab_call(xs, w, b, dim_output):
    """pallas_call over the batch: xs (Bpad, D_in) -> slab (Bpad, LANES)."""
    bpad, d_in = xs.shape
    lanes = w.shape[1]
    return pl.pallas_call(
        functools.partial(_a2c_kernel, dim_output=dim_output),
        out_shape=jax.ShapeDtypeStruct((bpad, lanes), jnp.float32),
        grid=(bpad // TILE_B,),
        in_specs=[
            pl.BlockSpec((TILE_B, d_in), lambda i: (i, 0)),   # stream x tiles
            pl.BlockSpec((d_in, lanes), lambda i: (0, 0)),    # W resident in VMEM
            pl.BlockSpec((1, lanes), lambda i: (0, 0)),       # b resident in VMEM
        ],
        out_specs=pl.BlockSpec((TILE_B, lanes), lambda i: (i, 0)),
        compiler_params=pltpu.CompilerParams(
            dimension_semantics=("parallel",)),               # dual-TC on v7x
    )(xs, w, b)


@functools.partial(jax.jit, static_argnames=("dim_output",))
def a2c_forward_slab(xs, w, b, *, dim_output):
    """Batched forward. Returns the lane-dense (B, LANES) slab:
    slab[:, :dim_output] = pi, slab[:, dim_output] = v, remaining lanes = 0."""
    xs = jnp.asarray(xs, jnp.float32)
    bsz, _ = xs.shape
    bpad = pl.cdiv(bsz, TILE_B) * TILE_B
    if bpad != bsz:
        xs = jnp.pad(xs, ((0, bpad - bsz), (0, 0)))
    out = _slab_call(xs, w, b, dim_output)
    return out[:bsz]


@functools.partial(jax.jit, static_argnames=("dim_output",))
def _a2c_single_jit(x, w, b, *, dim_output):
    x2 = jnp.asarray(x, jnp.float32).reshape(1, -1)
    xs = jnp.pad(x2, ((0, TILE_B - 1), (0, 0)))     # pad to one sublane tile
    out = _slab_call(xs, w, b, dim_output)
    pi = out[0, :dim_output]
    v = out[0, dim_output:dim_output + 1]
    return pi, v


def a2c_linear_forward(x, params):
    """pi(a|s), v(s) for a single state vector x (PyTorch forward semantics);
    beta was folded into `params` at prepare time."""
    w, b, dim_output = params
    return _a2c_single_jit(x, w, b, dim_output=dim_output)


def _init_linear_params(key, fan_in, fan_out):
    """Deterministic init mimicking torch.nn.Linear (uniform +/- 1/sqrt(fan_in))."""
    kw, kb = jax.random.split(key)
    bound = 1.0 / jnp.sqrt(jnp.float32(fan_in))
    w = jax.random.uniform(kw, (fan_out, fan_in), jnp.float32, -bound, bound)
    b = jax.random.uniform(kb, (fan_out,), jnp.float32, -bound, bound)
    return w, b


if __name__ == "__main__":
    dim_input = 32    # state-space dim
    dim_output = 8    # action-space dim
    batch = 16        # rollout batch for the batched path

    key = jax.random.PRNGKey(0)
    k_x, k_xb, k_actor, k_critic = jax.random.split(key, 4)

    x = jax.random.normal(k_x, (dim_input,), dtype=jnp.float32)
    xs = jax.random.normal(k_xb, (batch, dim_input), dtype=jnp.float32)
    wa, ba = _init_linear_params(k_actor, dim_input, dim_output)
    wc, bc = _init_linear_params(k_critic, dim_input, 1)

    # --- single-state forward (matches the PyTorch module), beta = 1.0 ---
    params = prepare_a2c_params(wa, ba, wc, bc, beta=1.0)
    pi, v = a2c_linear_forward(x, params)
    jax.block_until_ready((pi, v))

    logits_ref = x @ wa.T + ba
    pi_ref = jax.nn.softmax(logits_ref, axis=0)
    v_ref = x @ wc.T + bc
    assert pi.shape == (dim_output,) and v.shape == (1,)
    assert jnp.allclose(pi, pi_ref, atol=2e-2, rtol=2e-2)
    assert jnp.allclose(v, v_ref, atol=2e-2, rtol=2e-2)
    assert jnp.allclose(jnp.sum(pi), 1.0, atol=1e-2)

    # --- beta != 1 (folded into params at prepare time) ---
    beta2 = 2.5
    params_b = prepare_a2c_params(wa, ba, wc, bc, beta=beta2)
    pi_b, v_b = a2c_linear_forward(x, params_b)
    jax.block_until_ready((pi_b, v_b))
    pi_b_ref = jax.nn.softmax((x @ wa.T + ba) / beta2, axis=0)
    assert jnp.allclose(pi_b, pi_b_ref, atol=2e-2, rtol=2e-2)
    assert jnp.allclose(v_b, v_ref, atol=2e-2, rtol=2e-2)

    # --- batched, lane-dense slab path ---
    w_f, b_f, _ = params
    slab = a2c_forward_slab(xs, w_f, b_f, dim_output=dim_output)
    jax.block_until_ready(slab)
    pi_batch = slab[:, :dim_output]
    v_batch = slab[:, dim_output:dim_output + 1]
    pi_batch_ref = jax.nn.softmax(xs @ wa.T + ba, axis=-1)
    v_batch_ref = xs @ wc.T + bc
    assert slab.shape == (batch, w_f.shape[1])
    assert jnp.allclose(pi_batch, pi_batch_ref, atol=2e-2, rtol=2e-2)
    assert jnp.allclose(v_batch, v_batch_ref, atol=2e-2, rtol=2e-2)
    assert jnp.allclose(jnp.sum(pi_batch, axis=-1), 1.0, atol=1e-2)
    assert jnp.allclose(slab[:, dim_output + 1:], 0.0)   # pad lanes stay zero

    # TODO(synk): pick_action (torch.distributions.Categorical sampling) is
    # host-side control logic, not part of the forward hot path; not a kernel.
    # TODO(synk): longer term, emit this matmul+softmax as the epilogue of the
    # upstream policy-network kernel to drop the standalone dispatch entirely.
    print("KERNEL_OK")
</pallas_src>

<mosaic_0001>
module attributes {stable_mosaic.version = 11 : i64} {
  func.func @_a2c_kernel(%arg0: i32, %arg1: memref<8x32xf32, #tpu.memory_space<vmem>>, %arg2: memref<32x128xbf16, #tpu.memory_space<vmem>>, %arg3: memref<1x128xf32, #tpu.memory_space<vmem>>, %arg4: memref<8x128xf32, #tpu.memory_space<vmem>>) attributes {dimension_semantics = [#tpu.dimension_semantics<parallel>], iteration_bounds = array<i64: 1>, scalar_prefetch = 0 : i64, scratch_operands = 0 : i64, tpu.core_type = #tpu.core_type<tc>, window_params = [{transform_indices = @transform_0, window_bounds = array<i64: 8, 32>}, {pipeline_mode = #tpu.pipeline_mode<synchronous>, transform_indices = @transform_1, window_bounds = array<i64: 32, 128>}, {pipeline_mode = #tpu.pipeline_mode<synchronous>, transform_indices = @transform_2, window_bounds = array<i64: 1, 128>}, {transform_indices = @transform_3, window_bounds = array<i64: 8, 128>}]} {
    %c0 = arith.constant 0 : index
    %c0_0 = arith.constant 0 : index
    %0 = vector.load %arg1[%c0, %c0_0] : memref<8x32xf32, #tpu.memory_space<vmem>>, vector<8x32xf32>
    %1 = arith.truncf %0 : vector<8x32xf32> to vector<8x32xbf16>
    %c0_1 = arith.constant 0 : index
    %c0_2 = arith.constant 0 : index
    %2 = vector.load %arg2[%c0_1, %c0_2] : memref<32x128xbf16, #tpu.memory_space<vmem>>, vector<32x128xbf16>
    %cst = arith.constant dense<0.000000e+00> : vector<8x128xf32>
    %3 = tpu.matmul %1, %2, %cst {dimension_numbers = #tpu.dot_dimension_numbers<[1], [0], [0], [1], [0, 0, 1, 1], [], []>} : vector<8x32xbf16>, vector<32x128xbf16>, vector<8x128xf32> -> vector<8x128xf32>
    %c0_3 = arith.constant 0 : index
    %c0_4 = arith.constant 0 : index
    %4 = vector.load %arg3[%c0_3, %c0_4] : memref<1x128xf32, #tpu.memory_space<vmem>>, vector<1x128xf32>
    %5 = vector.broadcast %4 : vector<1x128xf32> to vector<8x128xf32>
    %6 = arith.addf %3, %5 : vector<8x128xf32>
    %7 = tpu.iota {dimensions = array<i32: 1>} : vector<8x128xi32>
    %c8_i32 = arith.constant 8 : i32
    %8 = vector.broadcast %c8_i32 : i32 to vector<8x128xi32>
    %9 = arith.cmpi slt, %7, %8 : vector<8x128xi32>
    %cst_5 = arith.constant -1.000000e+30 : f32
    %10 = vector.broadcast %cst_5 : f32 to vector<8x128xf32>
    %11 = arith.select %9, %6, %10 : vector<8x128xi1>, vector<8x128xf32>
    %cst_6 = arith.constant dense<0xFF800000> : vector<8xf32>
    %12 = vector.multi_reduction <maximumf>, %11, %cst_6 [1] : vector<8x128xf32> to vector<8xf32>
    %13 = vector.shape_cast %12 : vector<8xf32> to vector<8x1xf32>
    %14 = vector.broadcast %13 : vector<8x1xf32> to vector<8x128xf32>
    %15 = arith.subf %11, %14 : vector<8x128xf32>
    %16 = math.exp %15 : vector<8x128xf32>
    %cst_7 = arith.constant dense<0.000000e+00> : vector<8xf32>
    %17 = vector.multi_reduction <add>, %16, %cst_7 [1] : vector<8x128xf32> to vector<8xf32>
    %18 = vector.shape_cast %17 : vector<8xf32> to vector<8x1xf32>
    %19 = tpu.reciprocal %18 {approx = true} : vector<8x1xf32> -> vector<8x1xf32>
    %20 = vector.broadcast %19 : vector<8x1xf32> to vector<8x128xf32>
    %21 = arith.mulf %16, %20 : vector<8x128xf32>
    %22 = arith.select %9, %21, %6 : vector<8x128xi1>, vector<8x128xf32>
    %c0_8 = arith.constant 0 : index
    %c0_9 = arith.constant 0 : index
    %23 = vector.load %arg4[%c0_8, %c0_9] : memref<8x128xf32, #tpu.memory_space<vmem>>, vector<8x128xf32>
    tpu.vector_store %arg4[%c0_8, %c0_9], %22 {strides = array<i32>} : memref<8x128xf32, #tpu.memory_space<vmem>>, vector<8x128xf32>,
    return
  }
  func.func @transform_0(%arg0: i32) -> (i32, i32) {
    %c0_i32 = arith.constant 0 : i32
    %c0_i32_0 = arith.constant 0 : i32
    return %arg0, %c0_i32 : i32, i32
  }
  func.func @transform_1(%arg0: i32) -> (i32, i32) {
    %c0_i32 = arith.constant 0 : i32
    %c0_i32_0 = arith.constant 0 : i32
    %c0_i32_1 = arith.constant 0 : i32
    return %c0_i32, %c0_i32_0 : i32, i32
  }
  func.func @transform_2(%arg0: i32) -> (i32, i32) {
    %c0_i32 = arith.constant 0 : i32
    %c0_i32_0 = arith.constant 0 : i32
    %c0_i32_1 = arith.constant 0 : i32
    return %c0_i32, %c0_i32_0 : i32, i32
  }
  func.func @transform_3(%arg0: i32) -> (i32, i32) {
    %c0_i32 = arith.constant 0 : i32
    %c0_i32_0 = arith.constant 0 : i32
    return %arg0, %c0_i32 : i32, i32
  }
}

</mosaic_0001>

<llo_original>
// kernel: _a2c_single_jit.1
$region0: #{_a2c_single_jit.1}
  #allocation0 [shape = 'u32[]', space=smem, size = 0x4, offset = 0x4, fixed_abs, tag = 'smem constant byte address 0x4 - core index']
  #allocation1 [shape = 'u32[72,128]{1,0:T(1,128)}', space=vmem, size = 0x9000, scoped, tag = 'internal scratch']
  %s0 = inlined_call_operand.vmem [shape: f32[8,32], index: 0, kind: input, shape index: {}]
  %s1 = inlined_call_operand.hbm [shape: bf16[32,128], index: 1, kind: input, shape index: {}]
  %s2 = inlined_call_operand.vmem [shape: f32[1,128], index: 2, kind: input, shape index: {}]
  %s3 = inlined_call_operand.vmem [shape: f32[8,128], index: 3, kind: output, shape index: {}]
  %s4 = sld [smem:[#allocation0]]
  $region26: #{_a2c_single_jit.1} parent=0
    _
  %s6 = ssub.s32 1, %s4
  %s7 = scalar_select 0, %s6, %s4
  $region1: #{_a2c_single_jit.1} parent=0
    #allocation2 [shape = 'u8[8192]{0}', space=vmem, size = 0x2000, scoped, tag = 'input window, operand 1, single buffered']
    #allocation3 [shape = 's32[1]{0}', space=sflag, size = 0x4, scoped, tag = 'scoped memory for _a2c_single_jit.1']
    %8 = vsyncpa [#allocation3], 0
    // Predicated region
    $region2: #{_a2c_single_jit.1} parent=1 // pred_check
      _
    $region3: #{_a2c_single_jit.1} parent=1 // pred_check_branch
      %10 = sbr.rel (0) target = $region5
    $region4: #{_a2c_single_jit.1} parent=1 // pred_region
      _
    $region5: #{_a2c_single_jit.1} parent=1 // pred_fallthru
      _
    // Predicated region
    $region6: #{_a2c_single_jit.1} parent=1 // pred_check
      _
    $region7: #{_a2c_single_jit.1} parent=1 // pred_check_branch
      %12 = sbr.rel (0) target = $region9
    $region8: #{_a2c_single_jit.1} parent=1 // pred_region
      %14 = vsyncadd [#allocation3], 0
      %s15 = sshll.u32 %s1, 4
      %s16 = int_to_ptr.hbm [resolvable:$true] %s15
      %s17 = sshll.u32 [#allocation2], 4
      %s18 = int_to_ptr.vmem [resolvable:$true] %s17
      %23 = dma.hbm_to_vmem [thread:$0]  %s16, 256, %s18, [#allocation3], 64, 64, 4
    $region9: #{_a2c_single_jit.1} parent=1 // pred_fallthru
      _
    // Predicated region
    $region10: #{_a2c_single_jit.1} parent=1 // pred_check
      _
    $region11: #{_a2c_single_jit.1} parent=1 // pred_check_branch
      %25 = sbr.rel (0) target = $region13
    $region12: #{_a2c_single_jit.1} parent=1 // pred_region
      _
    $region13: #{_a2c_single_jit.1} parent=1 // pred_fallthru
      _
    // Predicated region
    $region14: #{_a2c_single_jit.1} parent=1 // pred_check
      _
    $region15: #{_a2c_single_jit.1} parent=1 // pred_check_branch
      %27 = sbr.rel (0) target = $region17
    $region16: #{_a2c_single_jit.1} parent=1 // pred_region
      %29 = dma.done [#allocation3], 256
    $region17: #{_a2c_single_jit.1} parent=1 // pred_fallthru
      _
    %v31 = vld [vmem:[%s0] sm:$0xff]
    %v32 = vpack.c.bf16 %v31, %v31
    %v33 = vld [vmem:[#allocation2] sm:$0xf]
    %v34 = vld [vmem:[#allocation2 + $0x4] sm:$0xf]
    %v35 = vld [vmem:[#allocation2 + $0x8] sm:$0xf]
    %v36 = vld [vmem:[#allocation2 + $0xc] sm:$0xf]
    %v37 = vld [vmem:[%s2] sm:$0x1]
    %v39 = vperm.slane %v37, 0
    %v45 = vunpack.c.l.b16 %v33
    %v46 = vunpack.c.l.b16 %v34
    %v47 = vunpack.c.l.b16 %v35
    %v48 = vunpack.c.l.b16 %v36
    %v49 = vpack.c.b16 %v46, %v45
    %v50 = vpack.c.b16 %v48, %v47
    %vm53 = vcmask 261120
    %v55 = vsel %vm53, %v32, 0
    %57 = vmatpush.bf16.msra.mxu0 0
    %58 = vmatpush.bf16.msra.mxu0 0
    %59 = vmatpush.bf16.msra.mxu0 0
    %60 = vmatpush.bf16.msra.mxu0 0
    %61 = vmatpush.bf16.msra.mxu0 0
    %62 = vmatpush.bf16.msra.mxu0 0
    %63 = vmatpush.bf16.msra.mxu0 %v50
    %64 = vmatpush.bf16.msra.mxu0 %v49
    %65 = vmatmul.bf16.gmra.mxu0 %v55
    %v66 = vpop.f32.mrf.mxu0
    %v67 = vadd.f32 %v39, %v66
    %v68 = vpop.f32.mrf.mxu0
    %69 = vdwg.mxu0
    %v70 = vlaneseq
    %v71 = vand.u32 %v70, 127
    %vm72 = vcmp.lt.s32.totalorder %v71, 8
    %v73 = vsel %vm72, %v67, -1e+30
    %74 = vmax.xlane.f32.xlu0 %v73
    %v75 = vpop.xlane.xlu0 %74
    %v76 = vsub.f32 %v73, %v75
    %v77 = vmul.f32 %v76, 1.442695
    %v78 = vpow.pop %v77
    %79 = vadd.xlane.f32.xlu0 %v78
    %v80 = vpop.xlane.xlu0 %79
    %v81 = vrcp.pop %v80
    %v82 = vmul.f32 %v78, %v81
    %v83 = vsel %vm72, %v82, %v67
    %84 = vst [vmem:[%s3] sm:$0xff] %v83
    // Predicated region
    $region18: #{_a2c_single_jit.1} parent=1 // pred_check
      _
    $region19: #{_a2c_single_jit.1} parent=1 // pred_check_branch
      %86 = sbr.rel (0) target = $region21
    $region20: #{_a2c_single_jit.1} parent=1 // pred_region
      _
    $region21: #{_a2c_single_jit.1} parent=1 // pred_fallthru
      _
    // Predicated region
    $region22: #{_a2c_single_jit.1} parent=1 // pred_check
      _
    $region23: #{_a2c_single_jit.1} parent=1 // pred_check_branch
      %88 = sbr.rel (0) target = $region25
    $region24: #{_a2c_single_jit.1} parent=1 // pred_region
      _
    $region25: #{_a2c_single_jit.1} parent=1 // pred_fallthru
      _
    %89 = vsyncpa [#allocation3], 1

</llo_original>
